<compile_context>
chip_gen: v6e
topology: v6e:2x2x1
jax: 0.10.0
libtpu: 0.0.40
codegen_flags: <defaults>
</compile_context>

<pallas_src>
import functools

import jax
import jax.numpy as jnp
from jax.experimental import pallas as pl
from jax.experimental.pallas import tpu as pltpu


def _round_up(a, m):
    return (a + m - 1) // m * m


def _make_kernel(d, mxu_dtype):
    inv_d2 = 1.0 / float(d * d)
    dn = (((1,), (0,)), ((), ()))  # plain matmul: contract LHS dim 1 / RHS dim 0

    def kernel(x_ref, y_ref, r_ref, wet_ref, wrt_ref, cos_ref, sin_ref, out_ref):
        # --- linear embedding layers on the MXU (lane-dense (K, N) weights) ---
        ex = jax.lax.dot_general(x_ref[...], wet_ref[...], dn,
                                 preferred_element_type=jnp.float32)   # (TB, D)
        ey = jax.lax.dot_general(y_ref[...], wet_ref[...], dn,
                                 preferred_element_type=jnp.float32)   # (TB, D)
        er = jax.lax.dot_general(r_ref[...], wrt_ref[...], dn,
                                 preferred_element_type=jnp.float32)   # (TB, D)

        # --- real DFT spectra via 6 MXU matmuls (EX = Xc - i*Xs, etc.) --------
        exb = ex.astype(mxu_dtype)
        eyb = ey.astype(mxu_dtype)
        erb = er.astype(mxu_dtype)
        cmat = cos_ref[...]
        smat = sin_ref[...]

        xc = jax.lax.dot_general(exb, cmat, dn, preferred_element_type=jnp.float32)
        xs = jax.lax.dot_general(exb, smat, dn, preferred_element_type=jnp.float32)
        yc = jax.lax.dot_general(eyb, cmat, dn, preferred_element_type=jnp.float32)
        ys = jax.lax.dot_general(eyb, smat, dn, preferred_element_type=jnp.float32)
        rc = jax.lax.dot_general(erb, cmat, dn, preferred_element_type=jnp.float32)
        rs = jax.lax.dot_general(erb, smat, dn, preferred_element_type=jnp.float32)

        # Re( conj(ER) * conj(EY) * EX ) with ER = Rc - iRs, EY = Yc - iYs,
        # EX = Xc - iXs:
        #   (Rc + iRs)(Yc + iYs) = P + iQ ;  Re((P + iQ)(Xc - iXs)) = P*Xc + Q*Xs
        p = rc * yc - rs * ys
        q = rc * ys + rs * yc
        re = p * xc + q * xs                                           # (TB, D) f32

        # Single cross-lane reduction; 1/D from the "mean", 1/D from Parseval.
        score = jnp.sum(re, axis=1, keepdims=True) * inv_d2            # (TB, 1)
        # Output is only 4*B bytes; lane-sparse store is fine (low priority).
        out_ref[...] = jax.nn.sigmoid(score)

    return kernel


@functools.partial(jax.jit, static_argnames=("mxu_dtype",))
def hole_forward(x, y, r, we, wr, *, mxu_dtype=jnp.bfloat16):
    """x:(B,E) y:(B,E) r:(B,R); we:(D,E), wr:(D,R) in nn.Linear (out,in) layout."""
    b, e = x.shape
    rdim = r.shape[1]
    d = we.shape[0]

    # Batch tiling: one block for small b; 128-row blocks otherwise so that any
    # b > 128 produces >= 2 grid steps (both v7x TensorCores busy).
    tb = _round_up(b, 16) if b <= 128 else 128
    bp = _round_up(b, tb)
    if bp != b:
        pad = ((0, bp - b), (0, 0))
        x, y, r = jnp.pad(x, pad), jnp.pad(y, pad), jnp.pad(r, pad)

    # Real DFT (twiddle) matrices, built in f32 with an integer mod so the
    # cos/sin arguments stay in [0, 2*pi).
    n = jnp.arange(d, dtype=jnp.int32)
    ang = (2.0 * jnp.pi / d) * ((n[:, None] * n[None, :]) % d).astype(jnp.float32)
    cmat = jnp.cos(ang)
    smat = jnp.sin(ang)

    # MXU operands: bf16 inputs, lane-dense (K, N) weight layout (pre-transposed
    # once in the wrapper, not per grid step in the kernel).
    x, y, r = x.astype(mxu_dtype), y.astype(mxu_dtype), r.astype(mxu_dtype)
    wet = we.T.astype(mxu_dtype)            # (E, D)
    wrt = wr.T.astype(mxu_dtype)            # (R, D)
    cmat = cmat.astype(mxu_dtype)
    smat = smat.astype(mxu_dtype)

    kernel = _make_kernel(d, mxu_dtype)

    itemsize = jnp.dtype(mxu_dtype).itemsize
    cost = pl.CostEstimate(
        flops=int(2 * bp * d * (2 * e + rdim + 6 * d) + 8 * bp * d),
        transcendentals=int(bp),
        bytes_accessed=int(itemsize * (bp * (2 * e + rdim)
                                       + d * (e + rdim + 2 * d)) + 4 * bp),
    )

    out = pl.pallas_call(
        kernel,
        out_shape=jax.ShapeDtypeStruct((bp, 1), jnp.float32),
        grid=(bp // tb,),
        in_specs=[
            pl.BlockSpec((tb, e), lambda i: (i, 0)),
            pl.BlockSpec((tb, e), lambda i: (i, 0)),
            pl.BlockSpec((tb, rdim), lambda i: (i, 0)),
            # TODO(synk): for very large num_entities add an E-contraction grid
            # axis ("arbitrary") with an f32 accumulator instead of holding the
            # full (E, D) weight block in VMEM (v7x has only 64 MiB VMEM).
            pl.BlockSpec((e, d), lambda i: (0, 0)),
            pl.BlockSpec((rdim, d), lambda i: (0, 0)),
            pl.BlockSpec((d, d), lambda i: (0, 0)),
            pl.BlockSpec((d, d), lambda i: (0, 0)),
        ],
        out_specs=pl.BlockSpec((tb, 1), lambda i: (i, 0)),
        compiler_params=pltpu.CompilerParams(
            dimension_semantics=("parallel",)),
        cost_estimate=cost,
    )(x, y, r, wet, wrt, cmat, smat)
    return out[:b]


def hole_reference(x, y, r, we, wr):
    """Plain-JAX f32 reference mirroring the PyTorch module (time domain)."""
    ex = x @ we.T
    ey = y @ we.T
    er = r @ wr.T
    d = ex.shape[1]
    cols = [jnp.mean(ex * jnp.roll(ey, k, axis=1), axis=1) for k in range(d)]
    c = jnp.stack(cols, axis=1)                       # (B, D)
    score = jnp.sum(er * c, axis=1, keepdims=True)    # diag(er @ c.T)
    return jax.nn.sigmoid(score)


if __name__ == "__main__":
    # Small shapes consistent with the module (D lane-friendly = 128).
    B, num_entities, num_relations, num_dim = 16, 32, 16, 128

    key = jax.random.PRNGKey(0)
    kx, ky, kr, kwe, kwr = jax.random.split(key, 5)

    x = jax.random.normal(kx, (B, num_entities), dtype=jnp.float32)
    y = jax.random.normal(ky, (B, num_entities), dtype=jnp.float32)
    r = jax.random.normal(kr, (B, num_relations), dtype=jnp.float32)

    # nn.Linear-style init: U(-1/sqrt(fan_in), 1/sqrt(fan_in)).
    we = jax.random.uniform(kwe, (num_dim, num_entities), dtype=jnp.float32,
                            minval=-1.0 / jnp.sqrt(float(num_entities)),
                            maxval=1.0 / jnp.sqrt(float(num_entities)))
    wr = jax.random.uniform(kwr, (num_dim, num_relations), dtype=jnp.float32,
                            minval=-1.0 / jnp.sqrt(float(num_relations)),
                            maxval=1.0 / jnp.sqrt(float(num_relations)))

    out = jax.block_until_ready(hole_forward(x, y, r, we, wr))
    ref = jax.block_until_ready(hole_reference(x, y, r, we, wr))

    assert out.shape == (B, 1), out.shape
    # Tolerance accounts for bf16 MXU operands (f32 accumulation throughout).
    assert jnp.allclose(out, ref, atol=1e-2, rtol=1e-2), (out, ref)
    print("KERNEL_OK")
</pallas_src>

<mosaic_0001>
module attributes {stable_mosaic.version = 11 : i64} {
  func.func @kernel(%arg0: i32, %arg1: memref<16x32xbf16, #tpu.memory_space<vmem>>, %arg2: memref<16x32xbf16, #tpu.memory_space<vmem>>, %arg3: memref<16x16xbf16, #tpu.memory_space<vmem>>, %arg4: memref<32x128xbf16, #tpu.memory_space<vmem>>, %arg5: memref<16x128xbf16, #tpu.memory_space<vmem>>, %arg6: memref<128x128xbf16, #tpu.memory_space<vmem>>, %arg7: memref<128x128xbf16, #tpu.memory_space<vmem>>, %arg8: memref<16x1xf32, #tpu.memory_space<vmem>>) attributes {dimension_semantics = [#tpu.dimension_semantics<parallel>], iteration_bounds = array<i64: 1>, scalar_prefetch = 0 : i64, scratch_operands = 0 : i64, tpu.core_type = #tpu.core_type<tc>, window_params = [{transform_indices = @transform_0, window_bounds = array<i64: 16, 32>}, {transform_indices = @transform_1, window_bounds = array<i64: 16, 32>}, {transform_indices = @transform_2, window_bounds = array<i64: 16, 16>}, {pipeline_mode = #tpu.pipeline_mode<synchronous>, transform_indices = @transform_3, window_bounds = array<i64: 32, 128>}, {pipeline_mode = #tpu.pipeline_mode<synchronous>, transform_indices = @transform_4, window_bounds = array<i64: 16, 128>}, {pipeline_mode = #tpu.pipeline_mode<synchronous>, transform_indices = @transform_5, window_bounds = array<i64: 128, 128>}, {pipeline_mode = #tpu.pipeline_mode<synchronous>, transform_indices = @transform_6, window_bounds = array<i64: 128, 128>}, {transform_indices = @transform_7, window_bounds = array<i64: 16, 1>}]} {
    %c0 = arith.constant 0 : index
    %c0_0 = arith.constant 0 : index
    %0 = vector.load %arg1[%c0, %c0_0] : memref<16x32xbf16, #tpu.memory_space<vmem>>, vector<16x32xbf16>
    %c0_1 = arith.constant 0 : index
    %c0_2 = arith.constant 0 : index
    %1 = vector.load %arg4[%c0_1, %c0_2] : memref<32x128xbf16, #tpu.memory_space<vmem>>, vector<32x128xbf16>
    %cst = arith.constant dense<0.000000e+00> : vector<16x128xf32>
    %2 = tpu.matmul %0, %1, %cst {dimension_numbers = #tpu.dot_dimension_numbers<[1], [0], [0], [1], [0, 0, 1, 1], [], []>} : vector<16x32xbf16>, vector<32x128xbf16>, vector<16x128xf32> -> vector<16x128xf32>
    %c0_3 = arith.constant 0 : index
    %c0_4 = arith.constant 0 : index
    %3 = vector.load %arg2[%c0_3, %c0_4] : memref<16x32xbf16, #tpu.memory_space<vmem>>, vector<16x32xbf16>
    %c0_5 = arith.constant 0 : index
    %c0_6 = arith.constant 0 : index
    %4 = vector.load %arg4[%c0_5, %c0_6] : memref<32x128xbf16, #tpu.memory_space<vmem>>, vector<32x128xbf16>
    %cst_7 = arith.constant dense<0.000000e+00> : vector<16x128xf32>
    %5 = tpu.matmul %3, %4, %cst_7 {dimension_numbers = #tpu.dot_dimension_numbers<[1], [0], [0], [1], [0, 0, 1, 1], [], []>} : vector<16x32xbf16>, vector<32x128xbf16>, vector<16x128xf32> -> vector<16x128xf32>
    %c0_8 = arith.constant 0 : index
    %c0_9 = arith.constant 0 : index
    %6 = vector.load %arg3[%c0_8, %c0_9] : memref<16x16xbf16, #tpu.memory_space<vmem>>, vector<16x16xbf16>
    %c0_10 = arith.constant 0 : index
    %c0_11 = arith.constant 0 : index
    %7 = vector.load %arg5[%c0_10, %c0_11] : memref<16x128xbf16, #tpu.memory_space<vmem>>, vector<16x128xbf16>
    %cst_12 = arith.constant dense<0.000000e+00> : vector<16x128xf32>
    %8 = tpu.matmul %6, %7, %cst_12 {dimension_numbers = #tpu.dot_dimension_numbers<[1], [0], [0], [1], [0, 0, 1, 1], [], []>} : vector<16x16xbf16>, vector<16x128xbf16>, vector<16x128xf32> -> vector<16x128xf32>
    %9 = arith.truncf %2 : vector<16x128xf32> to vector<16x128xbf16>
    %10 = arith.truncf %5 : vector<16x128xf32> to vector<16x128xbf16>
    %11 = arith.truncf %8 : vector<16x128xf32> to vector<16x128xbf16>
    %c0_13 = arith.constant 0 : index
    %c0_14 = arith.constant 0 : index
    %12 = vector.load %arg6[%c0_13, %c0_14] : memref<128x128xbf16, #tpu.memory_space<vmem>>, vector<128x128xbf16>
    %c0_15 = arith.constant 0 : index
    %c0_16 = arith.constant 0 : index
    %13 = vector.load %arg7[%c0_15, %c0_16] : memref<128x128xbf16, #tpu.memory_space<vmem>>, vector<128x128xbf16>
    %cst_17 = arith.constant dense<0.000000e+00> : vector<16x128xf32>
    %14 = tpu.matmul %9, %12, %cst_17 {dimension_numbers = #tpu.dot_dimension_numbers<[1], [0], [0], [1], [0, 0, 1, 1], [], []>} : vector<16x128xbf16>, vector<128x128xbf16>, vector<16x128xf32> -> vector<16x128xf32>
    %cst_18 = arith.constant dense<0.000000e+00> : vector<16x128xf32>
    %15 = tpu.matmul %9, %13, %cst_18 {dimension_numbers = #tpu.dot_dimension_numbers<[1], [0], [0], [1], [0, 0, 1, 1], [], []>} : vector<16x128xbf16>, vector<128x128xbf16>, vector<16x128xf32> -> vector<16x128xf32>
    %cst_19 = arith.constant dense<0.000000e+00> : vector<16x128xf32>
    %16 = tpu.matmul %10, %12, %cst_19 {dimension_numbers = #tpu.dot_dimension_numbers<[1], [0], [0], [1], [0, 0, 1, 1], [], []>} : vector<16x128xbf16>, vector<128x128xbf16>, vector<16x128xf32> -> vector<16x128xf32>
    %cst_20 = arith.constant dense<0.000000e+00> : vector<16x128xf32>
    %17 = tpu.matmul %10, %13, %cst_20 {dimension_numbers = #tpu.dot_dimension_numbers<[1], [0], [0], [1], [0, 0, 1, 1], [], []>} : vector<16x128xbf16>, vector<128x128xbf16>, vector<16x128xf32> -> vector<16x128xf32>
    %cst_21 = arith.constant dense<0.000000e+00> : vector<16x128xf32>
    %18 = tpu.matmul %11, %12, %cst_21 {dimension_numbers = #tpu.dot_dimension_numbers<[1], [0], [0], [1], [0, 0, 1, 1], [], []>} : vector<16x128xbf16>, vector<128x128xbf16>, vector<16x128xf32> -> vector<16x128xf32>
    %cst_22 = arith.constant dense<0.000000e+00> : vector<16x128xf32>
    %19 = tpu.matmul %11, %13, %cst_22 {dimension_numbers = #tpu.dot_dimension_numbers<[1], [0], [0], [1], [0, 0, 1, 1], [], []>} : vector<16x128xbf16>, vector<128x128xbf16>, vector<16x128xf32> -> vector<16x128xf32>
    %20 = arith.mulf %18, %16 : vector<16x128xf32>
    %21 = arith.mulf %19, %17 : vector<16x128xf32>
    %22 = arith.subf %20, %21 : vector<16x128xf32>
    %23 = arith.mulf %18, %17 : vector<16x128xf32>
    %24 = arith.mulf %19, %16 : vector<16x128xf32>
    %25 = arith.addf %23, %24 : vector<16x128xf32>
    %26 = arith.mulf %22, %14 : vector<16x128xf32>
    %27 = arith.mulf %25, %15 : vector<16x128xf32>
    %28 = arith.addf %26, %27 : vector<16x128xf32>
    %cst_23 = arith.constant dense<0.000000e+00> : vector<16xf32>
    %29 = vector.multi_reduction <add>, %28, %cst_23 [1] : vector<16x128xf32> to vector<16xf32>
    %30 = vector.shape_cast %29 : vector<16xf32> to vector<16x1xf32>
    %cst_24 = arith.constant 6.10351563E-5 : f32
    %31 = vector.broadcast %cst_24 : f32 to vector<16x1xf32>
    %32 = arith.mulf %30, %31 : vector<16x1xf32>
    %33 = arith.negf %32 : vector<16x1xf32>
    %34 = math.exp %33 : vector<16x1xf32>
    %cst_25 = arith.constant 1.000000e+00 : f32
    %35 = vector.broadcast %cst_25 : f32 to vector<16x1xf32>
    %36 = arith.addf %35, %34 : vector<16x1xf32>
    %37 = arith.divf %35, %36 : vector<16x1xf32>
    %c0_26 = arith.constant 0 : index
    %c0_27 = arith.constant 0 : index
    %38 = vector.load %arg8[%c0_26, %c0_27] : memref<16x1xf32, #tpu.memory_space<vmem>>, vector<16x1xf32>
    tpu.vector_store %arg8[%c0_26, %c0_27], %37 {strides = array<i32>} : memref<16x1xf32, #tpu.memory_space<vmem>>, vector<16x1xf32>,
    return
  }
  func.func @transform_0(%arg0: i32) -> (i32, i32) {
    %c0_i32 = arith.constant 0 : i32
    %c0_i32_0 = arith.constant 0 : i32
    return %arg0, %c0_i32 : i32, i32
  }
  func.func @transform_1(%arg0: i32) -> (i32, i32) {
    %c0_i32 = arith.constant 0 : i32
    %c0_i32_0 = arith.constant 0 : i32
    return %arg0, %c0_i32 : i32, i32
  }
  func.func @transform_2(%arg0: i32) -> (i32, i32) {
    %c0_i32 = arith.constant 0 : i32
    %c0_i32_0 = arith.constant 0 : i32
    return %arg0, %c0_i32 : i32, i32
  }
  func.func @transform_3(%arg0: i32) -> (i32, i32) {
    %c0_i32 = arith.constant 0 : i32
    %c0_i32_0 = arith.constant 0 : i32
    %c0_i32_1 = arith.constant 0 : i32
    return %c0_i32, %c0_i32_0 : i32, i32
  }
  func.func @transform_4(%arg0: i32) -> (i32, i32) {
    %c0_i32 = arith.constant 0 : i32
    %c0_i32_0 = arith.constant 0 : i32
    %c0_i32_1 = arith.constant 0 : i32
    return %c0_i32, %c0_i32_0 : i32, i32
  }
  func.func @transform_5(%arg0: i32) -> (i32, i32) {
    %c0_i32 = arith.constant 0 : i32
    %c0_i32_0 = arith.constant 0 : i32
    %c0_i32_1 = arith.constant 0 : i32
    return %c0_i32, %c0_i32_0 : i32, i32
  }
  func.func @transform_6(%arg0: i32) -> (i32, i32) {
    %c0_i32 = arith.constant 0 : i32
    %c0_i32_0 = arith.constant 0 : i32
    %c0_i32_1 = arith.constant 0 : i32
    return %c0_i32, %c0_i32_0 : i32, i32
  }
  func.func @transform_7(%arg0: i32) -> (i32, i32) {
    %c0_i32 = arith.constant 0 : i32
    %c0_i32_0 = arith.constant 0 : i32
    return %arg0, %c0_i32 : i32, i32
  }
}

</mosaic_0001>

<llo_original>
// kernel: hole_forward.1
$region0: #{hole_forward.1}
  #allocation0 [shape = 'u32[]', space=smem, size = 0x4, offset = 0x4, fixed_abs, tag = 'smem constant byte address 0x4 - core index']
  #allocation1 [shape = 'u32[144,128]{1,0:T(1,128)}', space=vmem, size = 0x12000, scoped, tag = 'internal scratch']
  %s0 = inlined_call_operand.vmem [shape: bf16[16,32], index: 0, kind: input, shape index: {}]
  %s1 = inlined_call_operand.vmem [shape: bf16[16,32], index: 1, kind: input, shape index: {}]
  %s2 = inlined_call_operand.vmem [shape: bf16[16,16], index: 2, kind: input, shape index: {}]
  %s3 = inlined_call_operand.vmem [shape: bf16[32,128], index: 3, kind: input, shape index: {}]
  %s4 = inlined_call_operand.vmem [shape: bf16[16,128], index: 4, kind: input, shape index: {}]
  %s5 = inlined_call_operand.vmem [shape: bf16[128,128], index: 5, kind: input, shape index: {}]
  %s6 = inlined_call_operand.vmem [shape: bf16[128,128], index: 6, kind: input, shape index: {}]
  %s7 = inlined_call_operand.vmem [shape: f32[16,1], index: 7, kind: output, shape index: {}]
  %s8 = sld [smem:[#allocation0]]
  $region38: #{hole_forward.1} parent=0
    _
  %s10 = ssub.s32 1, %s8
  %s11 = scalar_select 0, %s10, %s8
  // Predicated region
  $region2: #{hole_forward.1} parent=0 // pred_check
    _
  $region3: #{hole_forward.1} parent=0 // pred_check_branch
    %13 = sbr.rel (0) target = $region5
  $region4: #{hole_forward.1} parent=0 // pred_region
    _
  $region5: #{hole_forward.1} parent=0 // pred_fallthru
    _
  // Predicated region
  $region6: #{hole_forward.1} parent=0 // pred_check
    _
  $region7: #{hole_forward.1} parent=0 // pred_check_branch
    %15 = sbr.rel (0) target = $region9
  $region8: #{hole_forward.1} parent=0 // pred_region
    _
  $region9: #{hole_forward.1} parent=0 // pred_fallthru
    _
  // Predicated region
  $region10: #{hole_forward.1} parent=0 // pred_check
    _
  $region11: #{hole_forward.1} parent=0 // pred_check_branch
    %17 = sbr.rel (0) target = $region13
  $region12: #{hole_forward.1} parent=0 // pred_region
    _
  $region13: #{hole_forward.1} parent=0 // pred_fallthru
    _
  // Predicated region
  $region14: #{hole_forward.1} parent=0 // pred_check
    _
  $region15: #{hole_forward.1} parent=0 // pred_check_branch
    %19 = sbr.rel (0) target = $region17
  $region16: #{hole_forward.1} parent=0 // pred_region
    _
  $region17: #{hole_forward.1} parent=0 // pred_fallthru
    _
  // Predicated region
  $region18: #{hole_forward.1} parent=0 // pred_check
    _
  $region19: #{hole_forward.1} parent=0 // pred_check_branch
    %21 = sbr.rel (0) target = $region21
  $region20: #{hole_forward.1} parent=0 // pred_region
    _
  $region21: #{hole_forward.1} parent=0 // pred_fallthru
    _
  // Predicated region
  $region22: #{hole_forward.1} parent=0 // pred_check
    _
  $region23: #{hole_forward.1} parent=0 // pred_check_branch
    %23 = sbr.rel (0) target = $region25
  $region24: #{hole_forward.1} parent=0 // pred_region
    _
  $region25: #{hole_forward.1} parent=0 // pred_fallthru
    _
  // Predicated region
  $region26: #{hole_forward.1} parent=0 // pred_check
    _
  $region27: #{hole_forward.1} parent=0 // pred_check_branch
    %25 = sbr.rel (0) target = $region29
  $region28: #{hole_forward.1} parent=0 // pred_region
    _
  $region29: #{hole_forward.1} parent=0 // pred_fallthru
    _
  %v27 = vld [vmem:[%s0] sm:$0xf]
  %v28 = vld [vmem:[%s0 + $0x4] sm:$0xf]
  %v29 = vld [vmem:[%s3] sm:$0xf]
  %v30 = vld [vmem:[%s3 + $0x4] sm:$0xf]
  %v31 = vld [vmem:[%s3 + $0x8] sm:$0xf]
  %v32 = vld [vmem:[%s3 + $0xc] sm:$0xf]
  %v35 = vunpack.c.l.b16 %v27
  %v36 = vunpack.c.l.b16 %v28
  %v37 = vpack.c.b16 %v36, %v35
  %v42 = vunpack.c.l.b16 %v29
  %v43 = vunpack.c.l.b16 %v30
  %v44 = vunpack.c.l.b16 %v31
  %v45 = vunpack.c.l.b16 %v32
  %v46 = vpack.c.b16 %v43, %v42
  %v47 = vpack.c.b16 %v45, %v44
  %vm50 = vcmask 261120
  %v52 = vsel %vm50, %v37, 0
  %54 = vmatprep.subr.bf16.mxu0 0
  %55 = vmatpush1.bf16.msra.mxu0 0
  %56 = vmatprep.subr.bf16.mxu0 0
  %57 = vmatpush1.bf16.msra.mxu0 0
  %58 = vmatprep.subr.bf16.mxu0 0
  %59 = vmatpush1.bf16.msra.mxu0 0
  %60 = vmatprep.subr.bf16.mxu0 0
  %61 = vmatpush1.bf16.msra.mxu0 0
  %62 = vmatprep.subr.bf16.mxu0 0
  %63 = vmatpush1.bf16.msra.mxu0 0
  %64 = vmatprep.subr.bf16.mxu0 0
  %65 = vmatpush1.bf16.msra.mxu0 0
  %66 = vmatprep.subr.bf16.mxu0 0
  %67 = vmatpush1.bf16.msra.mxu0 %v47
  %68 = vmatprep.subr.bf16.mxu0 0
  %69 = vmatpush1.bf16.msra.mxu0 %v46
  %70 = vmatprep.subr.bf16.mxu0 0
  %71 = vmatpush2.bf16.msra.mxu0 0
  %72 = vmatprep.subr.bf16.mxu0 0
  %73 = vmatpush2.bf16.msra.mxu0 0
  %74 = vmatprep.subr.bf16.mxu0 0
  %75 = vmatpush2.bf16.msra.mxu0 0
  %76 = vmatprep.subr.bf16.mxu0 0
  %77 = vmatpush2.bf16.msra.mxu0 0
  %78 = vmatprep.subr.bf16.mxu0 0
  %79 = vmatpush2.bf16.msra.mxu0 0
  %80 = vmatprep.subr.bf16.mxu0 0
  %81 = vmatpush2.bf16.msra.mxu0 0
  %82 = vmatprep.subr.bf16.mxu0 0
  %83 = vmatpush2.bf16.msra.mxu0 0
  %84 = vmatprep.subr.bf16.mxu0 0
  %85 = vmatpush2.bf16.msra.mxu0 0
  %86 = vmatprep.mubr.bf16.mxu0 0
  %87 = vmatmul.mubr.bf16.gmra.mxu0 %v52
  %v88 = vpop.f32.mrf.mxu0
  %v89 = vadd.f32 0.0, %v88
  %v90 = vpop.f32.mrf.mxu0
  %v91 = vpop.f32.mrf.mxu0
  %v92 = vadd.f32 0.0, %v91
  %v93 = vpop.f32.mrf.mxu0
  %94 = vdwg.mxu0
  %v95 = vld [vmem:[%s1] sm:$0xf]
  %v96 = vld [vmem:[%s1 + $0x4] sm:$0xf]
  %v99 = vunpack.c.l.b16 %v95
  %v100 = vunpack.c.l.b16 %v96
  %v101 = vpack.c.b16 %v100, %v99
  %v103 = vsel %vm50, %v101, 0
  %105 = vmatprep.subr.bf16.mxu0 0
  %106 = vmatpush1.bf16.msra.mxu0 0
  %107 = vmatprep.subr.bf16.mxu0 0
  %108 = vmatpush1.bf16.msra.mxu0 0
  %109 = vmatprep.subr.bf16.mxu0 0
  %110 = vmatpush1.bf16.msra.mxu0 0
  %111 = vmatprep.subr.bf16.mxu0 0
  %112 = vmatpush1.bf16.msra.mxu0 0
  %113 = vmatprep.subr.bf16.mxu0 0
  %114 = vmatpush1.bf16.msra.mxu0 0
  %115 = vmatprep.subr.bf16.mxu0 0
  %116 = vmatpush1.bf16.msra.mxu0 0
  %117 = vmatprep.subr.bf16.mxu0 0
  %118 = vmatpush1.bf16.msra.mxu0 %v47
  %119 = vmatprep.subr.bf16.mxu0 0
  %120 = vmatpush1.bf16.msra.mxu0 %v46
  %121 = vmatprep.subr.bf16.mxu0 0
  %122 = vmatpush2.bf16.msra.mxu0 0
  %123 = vmatprep.subr.bf16.mxu0 0
  %124 = vmatpush2.bf16.msra.mxu0 0
  %125 = vmatprep.subr.bf16.mxu0 0
  %126 = vmatpush2.bf16.msra.mxu0 0
  %127 = vmatprep.subr.bf16.mxu0 0
  %128 = vmatpush2.bf16.msra.mxu0 0
  %129 = vmatprep.subr.bf16.mxu0 0
  %130 = vmatpush2.bf16.msra.mxu0 0
  %131 = vmatprep.subr.bf16.mxu0 0
  %132 = vmatpush2.bf16.msra.mxu0 0
  %133 = vmatprep.subr.bf16.mxu0 0
  %134 = vmatpush2.bf16.msra.mxu0 0
  %135 = vmatprep.subr.bf16.mxu0 0
  %136 = vmatpush2.bf16.msra.mxu0 0
  %137 = vmatprep.mubr.bf16.mxu0 0
  %138 = vmatmul.mubr.bf16.gmra.mxu0 %v103
  %v139 = vpop.f32.mrf.mxu0
  %v140 = vadd.f32 0.0, %v139
  %v141 = vpop.f32.mrf.mxu0
  %v142 = vpop.f32.mrf.mxu0
  %v143 = vadd.f32 0.0, %v142
  %v144 = vpop.f32.mrf.mxu0
  %145 = vdwg.mxu0
  %v146 = vld [vmem:[%s2] sm:$0xf]
  %v147 = vld [vmem:[%s2 + $0x4] sm:$0xf]
  %v148 = vld [vmem:[%s4] sm:$0xf]
  %v149 = vld [vmem:[%s4 + $0x4] sm:$0xf]
  %v152 = vunpack.c.l.b16 %v146
  %v153 = vunpack.c.l.b16 %v147
  %v154 = vpack.c.b16 %v153, %v152
  %v157 = vunpack.c.l.b16 %v148
  %v158 = vunpack.c.l.b16 %v149
  %v159 = vpack.c.b16 %v158, %v157
  %vm161 = vcmask 130048
  %v163 = vsel %vm161, %v154, 0
  %165 = vmatprep.subr.bf16.mxu0 0
  %166 = vmatpush1.bf16.msra.mxu0 0
  %167 = vmatprep.subr.bf16.mxu0 0
  %168 = vmatpush1.bf16.msra.mxu0 0
  %169 = vmatprep.subr.bf16.mxu0 0
  %170 = vmatpush1.bf16.msra.mxu0 0
  %171 = vmatprep.subr.bf16.mxu0 0
  %172 = vmatpush1.bf16.msra.mxu0 0
  %173 = vmatprep.subr.bf16.mxu0 0
  %174 = vmatpush1.bf16.msra.mxu0 0
  %175 = vmatprep.subr.bf16.mxu0 0
  %176 = vmatpush1.bf16.msra.mxu0 0
  %177 = vmatprep.subr.bf16.mxu0 0
  %178 = vmatpush1.bf16.msra.mxu0 0
  %179 = vmatprep.subr.bf16.mxu0 0
  %180 = vmatpush1.bf16.msra.mxu0 %v159
  %181 = vmatprep.subr.bf16.mxu0 0
  %182 = vmatpush2.bf16.msra.mxu0 0
  %183 = vmatprep.subr.bf16.mxu0 0
  %184 = vmatpush2.bf16.msra.mxu0 0
  %185 = vmatprep.subr.bf16.mxu0 0
  %186 = vmatpush2.bf16.msra.mxu0 0
  %187 = vmatprep.subr.bf16.mxu0 0
  %188 = vmatpush2.bf16.msra.mxu0 0
  %189 = vmatprep.subr.bf16.mxu0 0
  %190 = vmatpush2.bf16.msra.mxu0 0
  %191 = vmatprep.subr.bf16.mxu0 0
  %192 = vmatpush2.bf16.msra.mxu0 0
  %193 = vmatprep.subr.bf16.mxu0 0
  %194 = vmatpush2.bf16.msra.mxu0 0
  %195 = vmatprep.subr.bf16.mxu0 0
  %196 = vmatpush2.bf16.msra.mxu0 0
  %197 = vmatprep.mubr.bf16.mxu0 0
  %198 = vmatmul.mubr.bf16.gmra.mxu0 %v163
  %v199 = vpop.f32.mrf.mxu0
  %v200 = vadd.f32 0.0, %v199
  %v201 = vpop.f32.mrf.mxu0
  %v202 = vpop.f32.mrf.mxu0
  %v203 = vadd.f32 0.0, %v202
  %v204 = vpop.f32.mrf.mxu0
  %205 = vdwg.mxu0
  %v206 = vpack.c.bf16 %v92, %v89
  %v207 = vpack.c.bf16 %v143, %v140
  %v208 = vpack.c.bf16 %v203, %v200
  %v209 = vld [vmem:[%s5] sm:$0xf]
  %v210 = vld [vmem:[%s5 + $0x4] sm:$0xf]
  %v211 = vld [vmem:[%s5 + $0x8] sm:$0xf]
  %v212 = vld [vmem:[%s5 + $0xc] sm:$0xf]
  %v213 = vld [vmem:[%s5 + $0x10] sm:$0xf]
  %v214 = vld [vmem:[%s5 + $0x14] sm:$0xf]
  %v215 = vld [vmem:[%s5 + $0x18] sm:$0xf]
  %v216 = vld [vmem:[%s5 + $0x1c] sm:$0xf]
  %v217 = vld [vmem:[%s5 + $0x20] sm:$0xf]
  %v218 = vld [vmem:[%s5 + $0x24] sm:$0xf]
  %v219 = vld [vmem:[%s5 + $0x28] sm:$0xf]
  %v220 = vld [vmem:[%s5 + $0x2c] sm:$0xf]
  %v221 = vld [vmem:[%s5 + $0x30] sm:$0xf]
  %v222 = vld [vmem:[%s5 + $0x34] sm:$0xf]
  %v223 = vld [vmem:[%s5 + $0x38] sm:$0xf]
  %v224 = vld [vmem:[%s5 + $0x3c] sm:$0xf]
  %v225 = vld [vmem:[%s6] sm:$0xf]
  %v226 = vld [vmem:[%s6 + $0x4] sm:$0xf]
  %v227 = vld [vmem:[%s6 + $0x8] sm:$0xf]
  %v228 = vld [vmem:[%s6 + $0xc] sm:$0xf]
  %v229 = vld [vmem:[%s6 + $0x10] sm:$0xf]
  %v230 = vld [vmem:[%s6 + $0x14] sm:$0xf]
  %v231 = vld [vmem:[%s6 + $0x18] sm:$0xf]
  %v232 = vld [vmem:[%s6 + $0x1c] sm:$0xf]
  %v233 = vld [vmem:[%s6 + $0x20] sm:$0xf]
  %v234 = vld [vmem:[%s6 + $0x24] sm:$0xf]
  %v235 = vld [vmem:[%s6 + $0x28] sm:$0xf]
  %v236 = vld [vmem:[%s6 + $0x2c] sm:$0xf]
  %v237 = vld [vmem:[%s6 + $0x30] sm:$0xf]
  %v238 = vld [vmem:[%s6 + $0x34] sm:$0xf]
  %v239 = vld [vmem:[%s6 + $0x38] sm:$0xf]
  %v240 = vld [vmem:[%s6 + $0x3c] sm:$0xf]
  %v257 = vunpack.c.l.b16 %v209
  %v258 = vunpack.c.l.b16 %v210
  %v259 = vunpack.c.l.b16 %v211
  %v260 = vunpack.c.l.b16 %v212
  %v261 = vunpack.c.l.b16 %v213
  %v262 = vunpack.c.l.b16 %v214
  %v263 = vunpack.c.l.b16 %v215
  %v264 = vunpack.c.l.b16 %v216
  %v265 = vunpack.c.l.b16 %v217
  %v266 = vunpack.c.l.b16 %v218
  %v267 = vunpack.c.l.b16 %v219
  %v268 = vunpack.c.l.b16 %v220
  %v269 = vunpack.c.l.b16 %v221
  %v270 = vunpack.c.l.b16 %v222
  %v271 = vunpack.c.l.b16 %v223
  %v272 = vunpack.c.l.b16 %v224
  %v273 = vpack.c.b16 %v258, %v257
  %v274 = vpack.c.b16 %v260, %v259
  %v275 = vpack.c.b16 %v262, %v261
  %v276 = vpack.c.b16 %v264, %v263
  %v277 = vpack.c.b16 %v266, %v265
  %v278 = vpack.c.b16 %v268, %v267
  %v279 = vpack.c.b16 %v270, %v269
  %v280 = vpack.c.b16 %v272, %v271
  %289 = vmatprep.subr.bf16.mxu0 0
  %290 = vmatpush1.bf16.msra.mxu0 %v280
  %291 = vmatprep.subr.bf16.mxu0 0
  %292 = vmatpush1.bf16.msra.mxu0 %v279
  %293 = vmatprep.subr.bf16.mxu0 0
  %294 = vmatpush1.bf16.msra.mxu0 %v278
  %295 = vmatprep.subr.bf16.mxu0 0
  %296 = vmatpush1.bf16.msra.mxu0 %v277
  %297 = vmatprep.subr.bf16.mxu0 0
  %298 = vmatpush1.bf16.msra.mxu0 %v276
  %299 = vmatprep.subr.bf16.mxu0 0
  %300 = vmatpush1.bf16.msra.mxu0 %v275
  %301 = vmatprep.subr.bf16.mxu0 0
  %302 = vmatpush1.bf16.msra.mxu0 %v274
  %303 = vmatprep.subr.bf16.mxu0 0
  %304 = vmatpush1.bf16.msra.mxu0 %v273
  %305 = vmatprep.subr.bf16.mxu0 0
  %306 = vmatpush2.bf16.msra.mxu0 0
  %307 = vmatprep.subr.bf16.mxu0 0
  %308 = vmatpush2.bf16.msra.mxu0 0
  %309 = vmatprep.subr.bf16.mxu0 0
  %310 = vmatpush2.bf16.msra.mxu0 0
  %311 = vmatprep.subr.bf16.mxu0 0
  %312 = vmatpush2.bf16.msra.mxu0 0
  %313 = vmatprep.subr.bf16.mxu0 0
  %314 = vmatpush2.bf16.msra.mxu0 0
  %315 = vmatprep.subr.bf16.mxu0 0
  %316 = vmatpush2.bf16.msra.mxu0 0
  %317 = vmatprep.subr.bf16.mxu0 0
  %318 = vmatpush2.bf16.msra.mxu0 0
  %319 = vmatprep.subr.bf16.mxu0 0
  %320 = vmatpush2.bf16.msra.mxu0 0
  %321 = vmatprep.mubr.bf16.mxu0 0
  %322 = vmatmul.mubr.bf16.gmra.mxu0 %v206
  %v323 = vpop.f32.mrf.mxu0
  %v324 = vadd.f32 0.0, %v323
  %v325 = vpop.f32.mrf.mxu0
  %v326 = vpop.f32.mrf.mxu0
  %v327 = vadd.f32 0.0, %v326
  %v328 = vpop.f32.mrf.mxu0
  %329 = vdwg.mxu0
  %v346 = vunpack.c.l.b16 %v225
  %v347 = vunpack.c.l.b16 %v226
  %v348 = vunpack.c.l.b16 %v227
  %v349 = vunpack.c.l.b16 %v228
  %v350 = vunpack.c.l.b16 %v229
  %v351 = vunpack.c.l.b16 %v230
  %v352 = vunpack.c.l.b16 %v231
  %v353 = vunpack.c.l.b16 %v232
  %v354 = vunpack.c.l.b16 %v233
  %v355 = vunpack.c.l.b16 %v234
  %v356 = vunpack.c.l.b16 %v235
  %v357 = vunpack.c.l.b16 %v236
  %v358 = vunpack.c.l.b16 %v237
  %v359 = vunpack.c.l.b16 %v238
  %v360 = vunpack.c.l.b16 %v239
  %v361 = vunpack.c.l.b16 %v240
  %v362 = vpack.c.b16 %v347, %v346
  %v363 = vpack.c.b16 %v349, %v348
  %v364 = vpack.c.b16 %v351, %v350
  %v365 = vpack.c.b16 %v353, %v352
  %v366 = vpack.c.b16 %v355, %v354
  %v367 = vpack.c.b16 %v357, %v356
  %v368 = vpack.c.b16 %v359, %v358
  %v369 = vpack.c.b16 %v361, %v360
  %378 = vmatprep.subr.bf16.mxu0 0
  %379 = vmatpush1.bf16.msra.mxu0 %v369
  %380 = vmatprep.subr.bf16.mxu0 0
  %381 = vmatpush1.bf16.msra.mxu0 %v368
  %382 = vmatprep.subr.bf16.mxu0 0
  %383 = vmatpush1.bf16.msra.mxu0 %v367
  %384 = vmatprep.subr.bf16.mxu0 0
  %385 = vmatpush1.bf16.msra.mxu0 %v366
  %386 = vmatprep.subr.bf16.mxu0 0
  %387 = vmatpush1.bf16.msra.mxu0 %v365
  %388 = vmatprep.subr.bf16.mxu0 0
  %389 = vmatpush1.bf16.msra.mxu0 %v364
  %390 = vmatprep.subr.bf16.mxu0 0
  %391 = vmatpush1.bf16.msra.mxu0 %v363
  %392 = vmatprep.subr.bf16.mxu0 0
  %393 = vmatpush1.bf16.msra.mxu0 %v362
  %394 = vmatprep.subr.bf16.mxu0 0
  %395 = vmatpush2.bf16.msra.mxu0 0
  %396 = vmatprep.subr.bf16.mxu0 0
  %397 = vmatpush2.bf16.msra.mxu0 0
  %398 = vmatprep.subr.bf16.mxu0 0
  %399 = vmatpush2.bf16.msra.mxu0 0
  %400 = vmatprep.subr.bf16.mxu0 0
  %401 = vmatpush2.bf16.msra.mxu0 0
  %402 = vmatprep.subr.bf16.mxu0 0
  %403 = vmatpush2.bf16.msra.mxu0 0
  %404 = vmatprep.subr.bf16.mxu0 0
  %405 = vmatpush2.bf16.msra.mxu0 0
  %406 = vmatprep.subr.bf16.mxu0 0
  %407 = vmatpush2.bf16.msra.mxu0 0
  %408 = vmatprep.subr.bf16.mxu0 0
  %409 = vmatpush2.bf16.msra.mxu0 0
  %410 = vmatprep.mubr.bf16.mxu0 0
  %411 = vmatmul.mubr.bf16.gmra.mxu0 %v206
  %v412 = vpop.f32.mrf.mxu0
  %v413 = vadd.f32 0.0, %v412
  %v414 = vpop.f32.mrf.mxu0
  %v415 = vpop.f32.mrf.mxu0
  %v416 = vadd.f32 0.0, %v415
  %v417 = vpop.f32.mrf.mxu0
  %418 = vdwg.mxu0
  %419 = vmatprep.subr.bf16.mxu0 0
  %420 = vmatpush1.bf16.msra.mxu0 %v280
  %421 = vmatprep.subr.bf16.mxu0 0
  %422 = vmatpush1.bf16.msra.mxu0 %v279
  %423 = vmatprep.subr.bf16.mxu0 0
  %424 = vmatpush1.bf16.msra.mxu0 %v278
  %425 = vmatprep.subr.bf16.mxu0 0
  %426 = vmatpush1.bf16.msra.mxu0 %v277
  %427 = vmatprep.subr.bf16.mxu0 0
  %428 = vmatpush1.bf16.msra.mxu0 %v276
  %429 = vmatprep.subr.bf16.mxu0 0
  %430 = vmatpush1.bf16.msra.mxu0 %v275
  %431 = vmatprep.subr.bf16.mxu0 0
  %432 = vmatpush1.bf16.msra.mxu0 %v274
  %433 = vmatprep.subr.bf16.mxu0 0
  %434 = vmatpush1.bf16.msra.mxu0 %v273
  %435 = vmatprep.subr.bf16.mxu0 0
  %436 = vmatpush2.bf16.msra.mxu0 0
  %437 = vmatprep.subr.bf16.mxu0 0
  %438 = vmatpush2.bf16.msra.mxu0 0
  %439 = vmatprep.subr.bf16.mxu0 0
  %440 = vmatpush2.bf16.msra.mxu0 0
  %441 = vmatprep.subr.bf16.mxu0 0
  %442 = vmatpush2.bf16.msra.mxu0 0
  %443 = vmatprep.subr.bf16.mxu0 0
  %444 = vmatpush2.bf16.msra.mxu0 0
  %445 = vmatprep.subr.bf16.mxu0 0
  %446 = vmatpush2.bf16.msra.mxu0 0
  %447 = vmatprep.subr.bf16.mxu0 0
  %448 = vmatpush2.bf16.msra.mxu0 0
  %449 = vmatprep.subr.bf16.mxu0 0
  %450 = vmatpush2.bf16.msra.mxu0 0
  %451 = vmatprep.mubr.bf16.mxu0 0
  %452 = vmatmul.mubr.bf16.gmra.mxu0 %v207
  %v453 = vpop.f32.mrf.mxu0
  %v454 = vadd.f32 0.0, %v453
  %v455 = vpop.f32.mrf.mxu0
  %v456 = vpop.f32.mrf.mxu0
  %v457 = vadd.f32 0.0, %v456
  %v458 = vpop.f32.mrf.mxu0
  %459 = vdwg.mxu0
  %460 = vmatprep.subr.bf16.mxu0 0
  %461 = vmatpush1.bf16.msra.mxu0 %v369
  %462 = vmatprep.subr.bf16.mxu0 0
  %463 = vmatpush1.bf16.msra.mxu0 %v368
  %464 = vmatprep.subr.bf16.mxu0 0
  %465 = vmatpush1.bf16.msra.mxu0 %v367
  %466 = vmatprep.subr.bf16.mxu0 0
  %467 = vmatpush1.bf16.msra.mxu0 %v366
  %468 = vmatprep.subr.bf16.mxu0 0
  %469 = vmatpush1.bf16.msra.mxu0 %v365
  %470 = vmatprep.subr.bf16.mxu0 0
  %471 = vmatpush1.bf16.msra.mxu0 %v364
  %472 = vmatprep.subr.bf16.mxu0 0
  %473 = vmatpush1.bf16.msra.mxu0 %v363
  %474 = vmatprep.subr.bf16.mxu0 0
  %475 = vmatpush1.bf16.msra.mxu0 %v362
  %476 = vmatprep.subr.bf16.mxu0 0
  %477 = vmatpush2.bf16.msra.mxu0 0
  %478 = vmatprep.subr.bf16.mxu0 0
  %479 = vmatpush2.bf16.msra.mxu0 0
  %480 = vmatprep.subr.bf16.mxu0 0
  %481 = vmatpush2.bf16.msra.mxu0 0
  %482 = vmatprep.subr.bf16.mxu0 0
  %483 = vmatpush2.bf16.msra.mxu0 0
  %484 = vmatprep.subr.bf16.mxu0 0
  %485 = vmatpush2.bf16.msra.mxu0 0
  %486 = vmatprep.subr.bf16.mxu0 0
  %487 = vmatpush2.bf16.msra.mxu0 0
  %488 = vmatprep.subr.bf16.mxu0 0
  %489 = vmatpush2.bf16.msra.mxu0 0
  %490 = vmatprep.subr.bf16.mxu0 0
  %491 = vmatpush2.bf16.msra.mxu0 0
  %492 = vmatprep.mubr.bf16.mxu0 0
  %493 = vmatmul.mubr.bf16.gmra.mxu0 %v207
  %v494 = vpop.f32.mrf.mxu0
  %v495 = vadd.f32 0.0, %v494
  %v496 = vpop.f32.mrf.mxu0
  %v497 = vpop.f32.mrf.mxu0
  %v498 = vadd.f32 0.0, %v497
  %v499 = vpop.f32.mrf.mxu0
  %500 = vdwg.mxu0
  %501 = vmatprep.subr.bf16.mxu0 0
  %502 = vmatpush1.bf16.msra.mxu0 %v280
  %503 = vmatprep.subr.bf16.mxu0 0
  %504 = vmatpush1.bf16.msra.mxu0 %v279
  %505 = vmatprep.subr.bf16.mxu0 0
  %506 = vmatpush1.bf16.msra.mxu0 %v278
  %507 = vmatprep.subr.bf16.mxu0 0
  %508 = vmatpush1.bf16.msra.mxu0 %v277
  %509 = vmatprep.subr.bf16.mxu0 0
  %510 = vmatpush1.bf16.msra.mxu0 %v276
  %511 = vmatprep.subr.bf16.mxu0 0
  %512 = vmatpush1.bf16.msra.mxu0 %v275
  %513 = vmatprep.subr.bf16.mxu0 0
  %514 = vmatpush1.bf16.msra.mxu0 %v274
  %515 = vmatprep.subr.bf16.mxu0 0
  %516 = vmatpush1.bf16.msra.mxu0 %v273
  %517 = vmatprep.subr.bf16.mxu0 0
  %518 = vmatpush2.bf16.msra.mxu0 0
  %519 = vmatprep.subr.bf16.mxu0 0
  %520 = vmatpush2.bf16.msra.mxu0 0
  %521 = vmatprep.subr.bf16.mxu0 0
  %522 = vmatpush2.bf16.msra.mxu0 0
  %523 = vmatprep.subr.bf16.mxu0 0
  %524 = vmatpush2.bf16.msra.mxu0 0
  %525 = vmatprep.subr.bf16.mxu0 0
  %526 = vmatpush2.bf16.msra.mxu0 0
  %527 = vmatprep.subr.bf16.mxu0 0
  %528 = vmatpush2.bf16.msra.mxu0 0
  %529 = vmatprep.subr.bf16.mxu0 0
  %530 = vmatpush2.bf16.msra.mxu0 0
  %531 = vmatprep.subr.bf16.mxu0 0
  %532 = vmatpush2.bf16.msra.mxu0 0
  %533 = vmatprep.mubr.bf16.mxu0 0
  %534 = vmatmul.mubr.bf16.gmra.mxu0 %v208
  %v535 = vpop.f32.mrf.mxu0
  %v536 = vadd.f32 0.0, %v535
  %v537 = vpop.f32.mrf.mxu0
  %v538 = vpop.f32.mrf.mxu0
  %v539 = vadd.f32 0.0, %v538
  %v540 = vpop.f32.mrf.mxu0
  %541 = vdwg.mxu0
  %542 = vmatprep.subr.bf16.mxu0 0
  %543 = vmatpush1.bf16.msra.mxu0 %v369
  %544 = vmatprep.subr.bf16.mxu0 0
  %545 = vmatpush1.bf16.msra.mxu0 %v368
  %546 = vmatprep.subr.bf16.mxu0 0
  %547 = vmatpush1.bf16.msra.mxu0 %v367
  %548 = vmatprep.subr.bf16.mxu0 0
  %549 = vmatpush1.bf16.msra.mxu0 %v366
  %550 = vmatprep.subr.bf16.mxu0 0
  %551 = vmatpush1.bf16.msra.mxu0 %v365
  %552 = vmatprep.subr.bf16.mxu0 0
  %553 = vmatpush1.bf16.msra.mxu0 %v364
  %554 = vmatprep.subr.bf16.mxu0 0
  %555 = vmatpush1.bf16.msra.mxu0 %v363
  %556 = vmatprep.subr.bf16.mxu0 0
  %557 = vmatpush1.bf16.msra.mxu0 %v362
  %558 = vmatprep.subr.bf16.mxu0 0
  %559 = vmatpush2.bf16.msra.mxu0 0
  %560 = vmatprep.subr.bf16.mxu0 0
  %561 = vmatpush2.bf16.msra.mxu0 0
  %562 = vmatprep.subr.bf16.mxu0 0
  %563 = vmatpush2.bf16.msra.mxu0 0
  %564 = vmatprep.subr.bf16.mxu0 0
  %565 = vmatpush2.bf16.msra.mxu0 0
  %566 = vmatprep.subr.bf16.mxu0 0
  %567 = vmatpush2.bf16.msra.mxu0 0
  %568 = vmatprep.subr.bf16.mxu0 0
  %569 = vmatpush2.bf16.msra.mxu0 0
  %570 = vmatprep.subr.bf16.mxu0 0
  %571 = vmatpush2.bf16.msra.mxu0 0
  %572 = vmatprep.subr.bf16.mxu0 0
  %573 = vmatpush2.bf16.msra.mxu0 0
  %574 = vmatprep.mubr.bf16.mxu0 0
  %575 = vmatmul.mubr.bf16.gmra.mxu0 %v208
  %v576 = vpop.f32.mrf.mxu0
  %v577 = vadd.f32 0.0, %v576
  %v578 = vpop.f32.mrf.mxu0
  %v579 = vpop.f32.mrf.mxu0
  %v580 = vadd.f32 0.0, %v579
  %v581 = vpop.f32.mrf.mxu0
  %582 = vdwg.mxu0
  %v583 = vmul.f32 %v536, %v454
  %v584 = vmul.f32 %v539, %v457
  %v585 = vmul.f32 %v577, %v495
  %v586 = vmul.f32 %v580, %v498
  %v587 = vsub.f32 %v583, %v585
  %v588 = vsub.f32 %v584, %v586
  %v589 = vmul.f32 %v536, %v495
  %v590 = vmul.f32 %v539, %v498
  %v591 = vmul.f32 %v577, %v454
  %v592 = vmul.f32 %v580, %v457
  %v593 = vadd.f32 %v589, %v591
  %v594 = vadd.f32 %v590, %v592
  %v595 = vmul.f32 %v587, %v324
  %v596 = vmul.f32 %v588, %v327
  %v597 = vmul.f32 %v593, %v413
  %v598 = vmul.f32 %v594, %v416
  %v599 = vadd.f32 %v595, %v597
  %v600 = vadd.f32 %v596, %v598
  %601 = vadd.xlane.f32.xlu0 %v599
  %v602 = vpop.xlane.xlu0 %601
  %603 = vadd.xlane.f32.xlu0 %v600
  %v604 = vpop.xlane.xlu0 %603
  %v605 = vmul.f32 %v602, 6.1035156e-05
  %v606 = vmul.f32 %v604, 6.1035156e-05
  %v607 = vxor.u32 %v605, 2147483648
  %v608 = vxor.u32 %v606, 2147483648
  %v609 = vmul.f32 %v607, 1.442695
  %v610 = vpow.pop %v609
  %v611 = vmul.f32 %v608, 1.442695
  %v612 = vpow.pop %v611
  %v613 = vadd.f32 %v610, 1.0
  %v614 = vadd.f32 %v612, 1.0
  %v615 = vrcp.pop %v613
  %v616 = vmul.f32 1.0, %v615
  %v617 = vrcp.pop %v614
  %v618 = vmul.f32 1.0, %v617
  %vm619 = vcmask 7168
  %620 = vst.msk [vmem:[%s7] sm:$0xff] %vm619, %v616
  %621 = vst.msk [vmem:[%s7 + $0x8] sm:$0xff] %vm619, %v618
  // Predicated region
  $region30: #{hole_forward.1} parent=0 // pred_check
    _
  $region31: #{hole_forward.1} parent=0 // pred_check_branch
    %623 = sbr.rel (0) target = $region33
  $region32: #{hole_forward.1} parent=0 // pred_region
    _
  $region33: #{hole_forward.1} parent=0 // pred_fallthru
    _
  // Predicated region
  $region34: #{hole_forward.1} parent=0 // pred_check
    _
  $region35: #{hole_forward.1} parent=0 // pred_check_branch
    %625 = sbr.rel (0) target = $region37
  $region36: #{hole_forward.1} parent=0 // pred_region
    _
  $region37: #{hole_forward.1} parent=0 // pred_fallthru
    _

</llo_original>
